<compile_context>
chip_gen: v6e
topology: v6e:2x2x1
jax: 0.10.0
libtpu: 0.0.40
codegen_flags: <defaults>
</compile_context>

<pallas_src>
import functools

import jax
import jax.numpy as jnp
from jax.experimental import pallas as pl
from jax.experimental.pallas import tpu as pltpu

K_PAD = 128      # padded length of the top-k word table (lane width)
TM_MAX = 512     # max output rows per grid step (2 * 512 * vocab * 4B stays small)
U_BITS = 24      # uniform draws are integers in [0, 2^24)
SENTINEL = 1 << 26  # padded threshold lanes (never selected)


def _round_up(x, m):
    return ((x + m - 1) // m) * m


def _sample_onehot_kernel(u_ref, lo_ref, hi_ref, tab_ref, out_ref):
    """Weighted categorical sampling + one-hot encode (one row tile per step).

    u_ref   : VMEM (TM, 1)        int32   per-row uniform draw in [0, 2^24)
    lo_ref  : VMEM (1, K_PAD)     int32   lower thresholds (padded with SENTINEL)
    hi_ref  : VMEM (1, K_PAD)     int32   upper thresholds (padded with SENTINEL)
    tab_ref : VMEM (K_PAD, V)     bf16    one-hot table: row k = one_hot(words_idx[k])
    out_ref : VMEM (TM, V)        float32 one-hot rows
    """
    u = u_ref[...]                                   # (TM, 1)
    lo = lo_ref[...]                                 # (1, K_PAD)
    hi = hi_ref[...]                                 # (1, K_PAD)

    # Exactly one lane per row satisfies lo <= u < hi (bins partition [0, 2^24)).
    sel = jnp.logical_and(u >= lo, u < hi).astype(jnp.bfloat16)   # (TM, K_PAD)

    # One-hot via MXU: 0/1 bf16 operands, f32 accumulation -> exact {0.0, 1.0}.
    out_ref[...] = jnp.dot(sel, tab_ref[...], preferred_element_type=jnp.float32)


@functools.partial(jax.jit, static_argnames=("tm", "vocab_size"))
def _run_kernel(u, lo_pad, hi_pad, table, *, tm, vocab_size):
    bn_pad = u.shape[0]
    grid = bn_pad // tm
    return pl.pallas_call(
        _sample_onehot_kernel,
        out_shape=jax.ShapeDtypeStruct((bn_pad, vocab_size), jnp.float32),
        grid_spec=pltpu.PrefetchScalarGridSpec(
            num_scalar_prefetch=0,
            grid=(grid,),
            in_specs=[
                pl.BlockSpec((tm, 1), lambda i: (i, 0)),                 # draws
                pl.BlockSpec((1, K_PAD), lambda i: (0, 0)),              # lo thresholds
                pl.BlockSpec((1, K_PAD), lambda i: (0, 0)),              # hi thresholds
                pl.BlockSpec((K_PAD, vocab_size), lambda i: (0, 0)),     # one-hot table
            ],
            out_specs=pl.BlockSpec((tm, vocab_size), lambda i: (i, 0)),
        ),
        compiler_params=pltpu.CompilerParams(
            dimension_semantics=("parallel",)),
        cost_estimate=pl.CostEstimate(
            flops=2 * bn_pad * K_PAD * vocab_size,
            transcendentals=0,
            bytes_accessed=(bn_pad * vocab_size * 4          # output
                            + bn_pad * 4                     # draws
                            + 2 * K_PAD * 4                  # thresholds
                            + K_PAD * vocab_size * 2)),      # table
    )(u, lo_pad, hi_pad, table)


class MostCommonWordsPallas:
    """JAX/Pallas port of MostCommonWords with synthetic, deterministic stats."""

    def __init__(self, vocab_size=128, k_first=16, lens=(6, 8, 10), lens_weights=(1, 3, 2)):
        assert k_first <= K_PAD
        self.vocab_size = vocab_size
        self.k_first = k_first
        # TODO(synk): the original module derives word/length statistics from a
        # dataset via _get_stats; there is no dataset here, so deterministic
        # synthetic stats are used (top-k word ids 1..k with decreasing counts).
        self.words_idx = jnp.arange(1, k_first + 1, dtype=jnp.int32)
        self.word_weights = jnp.arange(k_first, 0, -1, dtype=jnp.float32)
        self.lens = jnp.asarray(lens, dtype=jnp.int32)
        self.lens_weights = jnp.asarray(lens_weights, dtype=jnp.float32)

        # Integer-domain CDF thresholds: bin k is [lo[k], hi[k]) over [0, 2^24).
        probs = self.word_weights / jnp.sum(self.word_weights)
        cdf = jnp.cumsum(probs)
        th = jnp.floor(cdf * jnp.float32(1 << U_BITS)).astype(jnp.int32)
        th = th.at[-1].set(1 << U_BITS)               # endpoint fix: cover all draws
        lo = jnp.concatenate([jnp.zeros((1,), jnp.int32), th[:-1]])
        hi = th
        self._lo_pad = jnp.full((1, K_PAD), SENTINEL, dtype=jnp.int32).at[0, :k_first].set(lo)
        self._hi_pad = jnp.full((1, K_PAD), SENTINEL, dtype=jnp.int32).at[0, :k_first].set(hi)

        # Precomputed (K_PAD, vocab) one-hot table: row k = one_hot(words_idx[k]).
        table = jnp.zeros((K_PAD, vocab_size), dtype=jnp.bfloat16)
        table = table.at[jnp.arange(k_first), self.words_idx].set(jnp.bfloat16(1.0))
        self._table = table

    def __call__(self, images, reports=None, free=False, *, key):
        batch_size = images.shape[0]
        if reports is None or free:
            # host-side choice of n_words from the report-length distribution
            lkey, key = jax.random.split(key)
            p = self.lens_weights / jnp.sum(self.lens_weights)
            n_words = int(jax.random.choice(lkey, self.lens, (), p=p))
        else:
            n_words = int(reports.shape[-1])

        bn = batch_size * n_words
        tm = min(TM_MAX, _round_up(bn, 8))
        bn_pad = _round_up(bn, tm)

        # One 24-bit uniform draw per output row (padded rows are sliced off).
        u = jax.random.randint(key, (bn_pad, 1), 0, 1 << U_BITS, dtype=jnp.int32)

        flat = _run_kernel(u, self._lo_pad, self._hi_pad, self._table,
                           tm=tm, vocab_size=self.vocab_size)
        out = flat[:bn].reshape(batch_size, n_words, self.vocab_size)
        return (out,)


if __name__ == "__main__":
    key = jax.random.PRNGKey(0)
    k_img, k_rep, k_fwd = jax.random.split(key, 3)

    batch, channels, spatial, seq = 2, 4, 16, 8
    images = jax.random.normal(k_img, (batch, channels, spatial, spatial), dtype=jnp.float32)
    reports_in = jax.random.randint(k_rep, (batch, seq), 0, 128, dtype=jnp.int32)

    model = MostCommonWordsPallas(vocab_size=128, k_first=16)
    (reports_oh,) = model(images, reports=reports_in, key=k_fwd)
    reports_oh = jax.block_until_ready(reports_oh)

    # sanity checks: shape, dtype, exactly one-hot rows, ids within the top-k table
    assert reports_oh.shape == (batch, seq, 128)
    assert reports_oh.dtype == jnp.float32
    assert bool(jnp.all(jnp.sum(reports_oh, axis=-1) == 1.0))
    sampled_ids = jnp.argmax(reports_oh, axis=-1)
    assert bool(jnp.all((sampled_ids >= 1) & (sampled_ids <= model.k_first)))

    print("KERNEL_OK")
</pallas_src>

<mosaic_0001>
module attributes {stable_mosaic.version = 11 : i64} {
  func.func @_sample_onehot_kernel(%arg0: i32, %arg1: memref<16x1xi32, #tpu.memory_space<vmem>>, %arg2: memref<1x128xi32, #tpu.memory_space<vmem>>, %arg3: memref<1x128xi32, #tpu.memory_space<vmem>>, %arg4: memref<128x128xbf16, #tpu.memory_space<vmem>>, %arg5: memref<16x128xf32, #tpu.memory_space<vmem>>) attributes {dimension_semantics = [#tpu.dimension_semantics<parallel>], iteration_bounds = array<i64: 1>, scalar_prefetch = 0 : i64, scratch_operands = 0 : i64, tpu.core_type = #tpu.core_type<tc>, window_params = [{transform_indices = @transform_0, window_bounds = array<i64: 16, 1>}, {pipeline_mode = #tpu.pipeline_mode<synchronous>, transform_indices = @transform_1, window_bounds = array<i64: 1, 128>}, {pipeline_mode = #tpu.pipeline_mode<synchronous>, transform_indices = @transform_2, window_bounds = array<i64: 1, 128>}, {pipeline_mode = #tpu.pipeline_mode<synchronous>, transform_indices = @transform_3, window_bounds = array<i64: 128, 128>}, {transform_indices = @transform_4, window_bounds = array<i64: 16, 128>}]} {
    %c0 = arith.constant 0 : index
    %c0_0 = arith.constant 0 : index
    %0 = vector.load %arg1[%c0, %c0_0] : memref<16x1xi32, #tpu.memory_space<vmem>>, vector<16x1xi32>
    %c0_1 = arith.constant 0 : index
    %c0_2 = arith.constant 0 : index
    %1 = vector.load %arg2[%c0_1, %c0_2] : memref<1x128xi32, #tpu.memory_space<vmem>>, vector<1x128xi32>
    %c0_3 = arith.constant 0 : index
    %c0_4 = arith.constant 0 : index
    %2 = vector.load %arg3[%c0_3, %c0_4] : memref<1x128xi32, #tpu.memory_space<vmem>>, vector<1x128xi32>
    %3 = vector.broadcast %0 : vector<16x1xi32> to vector<16x128xi32>
    %4 = vector.broadcast %1 : vector<1x128xi32> to vector<16x128xi32>
    %5 = arith.cmpi sge, %3, %4 : vector<16x128xi32>
    %6 = vector.broadcast %0 : vector<16x1xi32> to vector<16x128xi32>
    %7 = vector.broadcast %2 : vector<1x128xi32> to vector<16x128xi32>
    %8 = arith.cmpi slt, %6, %7 : vector<16x128xi32>
    %9 = arith.andi %5, %8 : vector<16x128xi1>
    %10 = arith.extui %9 : vector<16x128xi1> to vector<16x128xi32>
    %11 = arith.sitofp %10 : vector<16x128xi32> to vector<16x128xf32>
    %12 = arith.truncf %11 : vector<16x128xf32> to vector<16x128xbf16>
    %c0_5 = arith.constant 0 : index
    %c0_6 = arith.constant 0 : index
    %13 = vector.load %arg4[%c0_5, %c0_6] : memref<128x128xbf16, #tpu.memory_space<vmem>>, vector<128x128xbf16>
    %cst = arith.constant dense<0.000000e+00> : vector<16x128xf32>
    %14 = tpu.matmul %12, %13, %cst {dimension_numbers = #tpu.dot_dimension_numbers<[1], [0], [0], [1], [0, 0, 1, 1], [], []>} : vector<16x128xbf16>, vector<128x128xbf16>, vector<16x128xf32> -> vector<16x128xf32>
    %c0_7 = arith.constant 0 : index
    %c0_8 = arith.constant 0 : index
    %15 = vector.load %arg5[%c0_7, %c0_8] : memref<16x128xf32, #tpu.memory_space<vmem>>, vector<16x128xf32>
    tpu.vector_store %arg5[%c0_7, %c0_8], %14 {strides = array<i32>} : memref<16x128xf32, #tpu.memory_space<vmem>>, vector<16x128xf32>,
    return
  }
  func.func @transform_0(%arg0: i32) -> (i32, i32) {
    %c0_i32 = arith.constant 0 : i32
    %c0_i32_0 = arith.constant 0 : i32
    return %arg0, %c0_i32 : i32, i32
  }
  func.func @transform_1(%arg0: i32) -> (i32, i32) {
    %c0_i32 = arith.constant 0 : i32
    %c0_i32_0 = arith.constant 0 : i32
    %c0_i32_1 = arith.constant 0 : i32
    return %c0_i32, %c0_i32_0 : i32, i32
  }
  func.func @transform_2(%arg0: i32) -> (i32, i32) {
    %c0_i32 = arith.constant 0 : i32
    %c0_i32_0 = arith.constant 0 : i32
    %c0_i32_1 = arith.constant 0 : i32
    return %c0_i32, %c0_i32_0 : i32, i32
  }
  func.func @transform_3(%arg0: i32) -> (i32, i32) {
    %c0_i32 = arith.constant 0 : i32
    %c0_i32_0 = arith.constant 0 : i32
    %c0_i32_1 = arith.constant 0 : i32
    return %c0_i32, %c0_i32_0 : i32, i32
  }
  func.func @transform_4(%arg0: i32) -> (i32, i32) {
    %c0_i32 = arith.constant 0 : i32
    %c0_i32_0 = arith.constant 0 : i32
    return %arg0, %c0_i32 : i32, i32
  }
}

</mosaic_0001>

<llo_original>
// kernel: _run_kernel.1
$region0: #{_run_kernel.1}
  #allocation0 [shape = 'u32[]', space=smem, size = 0x4, offset = 0x4, fixed_abs, tag = 'smem constant byte address 0x4 - core index']
  #allocation1 [shape = 'u32[144,128]{1,0:T(1,128)}', space=vmem, size = 0x12000, scoped, tag = 'internal scratch']
  %s0 = inlined_call_operand.vmem [shape: s32[16,1], index: 0, kind: input, shape index: {}]
  %s1 = inlined_call_operand.vmem [shape: s32[1,128], index: 1, kind: input, shape index: {}]
  %s2 = inlined_call_operand.vmem [shape: s32[1,128], index: 2, kind: input, shape index: {}]
  %s3 = inlined_call_operand.hbm [shape: bf16[128,128], index: 3, kind: input, shape index: {}]
  %s4 = inlined_call_operand.hbm [shape: f32[16,128], index: 4, kind: output, shape index: {}]
  %s5 = sld [smem:[#allocation0]]
  $region30: #{_run_kernel.1} parent=0
    _
  %s7 = ssub.s32 1, %s5
  %s8 = scalar_select 0, %s7, %s5
  $region1: #{_run_kernel.1} parent=0
    #allocation2 [shape = 'u8[32768]{0}', space=vmem, size = 0x8000, scoped, tag = 'input window, operand 3, single buffered']
    #allocation3 [shape = 's32[1]{0}', space=sflag, size = 0x4, scoped, tag = 'scoped memory for _run_kernel.1']
    #allocation4 [shape = 's32[1]{0}', space=sflag, size = 0x4, scoped, tag = 'scoped memory for _run_kernel.1']
    #allocation5 [shape = 'u8[8192]{0}', space=vmem, size = 0x2000, scoped, tag = 'output window, operand 0, single buffered']
    %9 = vsyncpa [#allocation3], 0
    %10 = vsyncpa [#allocation4], 0
    // Predicated region
    $region2: #{_run_kernel.1} parent=1 // pred_check
      _
    $region3: #{_run_kernel.1} parent=1 // pred_check_branch
      %12 = sbr.rel (0) target = $region5
    $region4: #{_run_kernel.1} parent=1 // pred_region
      _
    $region5: #{_run_kernel.1} parent=1 // pred_fallthru
      _
    // Predicated region
    $region6: #{_run_kernel.1} parent=1 // pred_check
      _
    $region7: #{_run_kernel.1} parent=1 // pred_check_branch
      %14 = sbr.rel (0) target = $region9
    $region8: #{_run_kernel.1} parent=1 // pred_region
      _
    $region9: #{_run_kernel.1} parent=1 // pred_fallthru
      _
    // Predicated region
    $region10: #{_run_kernel.1} parent=1 // pred_check
      _
    $region11: #{_run_kernel.1} parent=1 // pred_check_branch
      %16 = sbr.rel (0) target = $region13
    $region12: #{_run_kernel.1} parent=1 // pred_region
      _
    $region13: #{_run_kernel.1} parent=1 // pred_fallthru
      _
    // Predicated region
    $region14: #{_run_kernel.1} parent=1 // pred_check
      _
    $region15: #{_run_kernel.1} parent=1 // pred_check_branch
      %18 = sbr.rel (0) target = $region17
    $region16: #{_run_kernel.1} parent=1 // pred_region
      %s20 = ssub.s32 1024, 1024
      %21 = vsyncadd [#allocation3], %s20
      %s22 = sshll.u32 [#allocation2], 4
      %s23 = int_to_ptr.vmem [resolvable:$true] %s22
      %28 = dma.hbm_to_vmem [thread:$0]  %s3, 1024, %s23, [#allocation3], 64, 64, 4
    $region17: #{_run_kernel.1} parent=1 // pred_fallthru
      _
    // Predicated region
    $region18: #{_run_kernel.1} parent=1 // pred_check
      _
    $region19: #{_run_kernel.1} parent=1 // pred_check_branch
      %30 = sbr.rel (0) target = $region21
    $region20: #{_run_kernel.1} parent=1 // pred_region
      %31 = dma.done [#allocation3], 1024
    $region21: #{_run_kernel.1} parent=1 // pred_fallthru
      _
    %v33 = vld [vmem:[%s0] sm:$0xff]
    %v34 = vld [vmem:[%s0 + $0x8] sm:$0xff]
    %v35 = vld [vmem:[%s1] sm:$0x1]
    %v36 = vld [vmem:[%s2] sm:$0x1]
    %37 = vset.pattern.permute.xlu0 0
    %38 = vperm.xlu0 %37, %v33
    %v39 = vpop.permute.xlu0 %38
    %40 = vset.pattern.permute.xlu0 0
    %41 = vperm.xlu0 %40, %v34
    %v42 = vpop.permute.xlu0 %41
    %v43 = vlaneseq
    %v44 = vshrl.u32 %v43, 7
    %v45 = vsub.s32 0, %v44
    %v46 = vrot.slane %v35, %v45
    %vm47 = vcmp.ge.s32.totalorder %v39, %v46
    %vm48 = vcmp.ge.s32.totalorder %v42, %v46
    %v49 = vlaneseq
    %v50 = vshrl.u32 %v49, 7
    %v51 = vsub.s32 0, %v50
    %v52 = vrot.slane %v36, %v51
    %vm53 = vcmp.lt.s32.totalorder %v39, %v52
    %vm54 = vcmp.lt.s32.totalorder %v42, %v52
    %vm55 = vmand %vm47, %vm53
    %vm56 = vmand %vm48, %vm54
    %v57 = vsel %vm55, 1, 0
    %v58 = vsel %vm56, 1, 0
    %v59 = vcvt.s32.f32 %v57
    %v60 = vcvt.s32.f32 %v58
    %v61 = vpack.c.bf16 %v60, %v59
    %v62 = vld [vmem:[#allocation2] sm:$0xf]
    %v63 = vld [vmem:[#allocation2 + $0x4] sm:$0xf]
    %v64 = vld [vmem:[#allocation2 + $0x8] sm:$0xf]
    %v65 = vld [vmem:[#allocation2 + $0xc] sm:$0xf]
    %v66 = vld [vmem:[#allocation2 + $0x10] sm:$0xf]
    %v67 = vld [vmem:[#allocation2 + $0x14] sm:$0xf]
    %v68 = vld [vmem:[#allocation2 + $0x18] sm:$0xf]
    %v69 = vld [vmem:[#allocation2 + $0x1c] sm:$0xf]
    %v70 = vld [vmem:[#allocation2 + $0x20] sm:$0xf]
    %v71 = vld [vmem:[#allocation2 + $0x24] sm:$0xf]
    %v72 = vld [vmem:[#allocation2 + $0x28] sm:$0xf]
    %v73 = vld [vmem:[#allocation2 + $0x2c] sm:$0xf]
    %v74 = vld [vmem:[#allocation2 + $0x30] sm:$0xf]
    %v75 = vld [vmem:[#allocation2 + $0x34] sm:$0xf]
    %v76 = vld [vmem:[#allocation2 + $0x38] sm:$0xf]
    %v77 = vld [vmem:[#allocation2 + $0x3c] sm:$0xf]
    %v94 = vunpack.c.l.b16 %v62
    %v95 = vunpack.c.l.b16 %v63
    %v96 = vunpack.c.l.b16 %v64
    %v97 = vunpack.c.l.b16 %v65
    %v98 = vunpack.c.l.b16 %v66
    %v99 = vunpack.c.l.b16 %v67
    %v100 = vunpack.c.l.b16 %v68
    %v101 = vunpack.c.l.b16 %v69
    %v102 = vunpack.c.l.b16 %v70
    %v103 = vunpack.c.l.b16 %v71
    %v104 = vunpack.c.l.b16 %v72
    %v105 = vunpack.c.l.b16 %v73
    %v106 = vunpack.c.l.b16 %v74
    %v107 = vunpack.c.l.b16 %v75
    %v108 = vunpack.c.l.b16 %v76
    %v109 = vunpack.c.l.b16 %v77
    %v110 = vpack.c.b16 %v95, %v94
    %v111 = vpack.c.b16 %v97, %v96
    %v112 = vpack.c.b16 %v99, %v98
    %v113 = vpack.c.b16 %v101, %v100
    %v114 = vpack.c.b16 %v103, %v102
    %v115 = vpack.c.b16 %v105, %v104
    %v116 = vpack.c.b16 %v107, %v106
    %v117 = vpack.c.b16 %v109, %v108
    %126 = vmatprep.subr.bf16.mxu0 0
    %127 = vmatpush1.bf16.msra.mxu0 %v117
    %128 = vmatprep.subr.bf16.mxu0 0
    %129 = vmatpush1.bf16.msra.mxu0 %v116
    %130 = vmatprep.subr.bf16.mxu0 0
    %131 = vmatpush1.bf16.msra.mxu0 %v115
    %132 = vmatprep.subr.bf16.mxu0 0
    %133 = vmatpush1.bf16.msra.mxu0 %v114
    %134 = vmatprep.subr.bf16.mxu0 0
    %135 = vmatpush1.bf16.msra.mxu0 %v113
    %136 = vmatprep.subr.bf16.mxu0 0
    %137 = vmatpush1.bf16.msra.mxu0 %v112
    %138 = vmatprep.subr.bf16.mxu0 0
    %139 = vmatpush1.bf16.msra.mxu0 %v111
    %140 = vmatprep.subr.bf16.mxu0 0
    %141 = vmatpush1.bf16.msra.mxu0 %v110
    %142 = vmatprep.subr.bf16.mxu0 0
    %143 = vmatpush2.bf16.msra.mxu0 0
    %144 = vmatprep.subr.bf16.mxu0 0
    %145 = vmatpush2.bf16.msra.mxu0 0
    %146 = vmatprep.subr.bf16.mxu0 0
    %147 = vmatpush2.bf16.msra.mxu0 0
    %148 = vmatprep.subr.bf16.mxu0 0
    %149 = vmatpush2.bf16.msra.mxu0 0
    %150 = vmatprep.subr.bf16.mxu0 0
    %151 = vmatpush2.bf16.msra.mxu0 0
    %152 = vmatprep.subr.bf16.mxu0 0
    %153 = vmatpush2.bf16.msra.mxu0 0
    %154 = vmatprep.subr.bf16.mxu0 0
    %155 = vmatpush2.bf16.msra.mxu0 0
    %156 = vmatprep.subr.bf16.mxu0 0
    %157 = vmatpush2.bf16.msra.mxu0 0
    %158 = vmatprep.mubr.bf16.mxu0 0
    %159 = vmatmul.mubr.bf16.gmra.mxu0 %v61
    %v160 = vpop.f32.mrf.mxu0
    %v161 = vadd.f32 0.0, %v160
    %v162 = vpop.f32.mrf.mxu0
    %v163 = vpop.f32.mrf.mxu0
    %v164 = vadd.f32 0.0, %v163
    %v165 = vpop.f32.mrf.mxu0
    %166 = vdwg.mxu0
    %167 = vst [vmem:[#allocation5] sm:$0xff] %v161
    %168 = vst [vmem:[#allocation5 + $0x8] sm:$0xff] %v164
    // Predicated region
    $region22: #{_run_kernel.1} parent=1 // pred_check
      _
    $region23: #{_run_kernel.1} parent=1 // pred_check_branch
      %170 = sbr.rel (0) target = $region25
    $region24: #{_run_kernel.1} parent=1 // pred_region
      %s172 = ssub.s32 256, 256
      %173 = vsyncadd [#allocation4], %s172
      %s174 = sshll.u32 [#allocation5], 4
      %s175 = int_to_ptr.vmem [resolvable:$true] %s174
      %180 = dma.vmem_to_hbm [thread:$0]  %s175, 256, %s4, [#allocation4], 128, 128, 8
    $region25: #{_run_kernel.1} parent=1 // pred_fallthru
      _
    // Predicated region
    $region26: #{_run_kernel.1} parent=1 // pred_check
      _
    $region27: #{_run_kernel.1} parent=1 // pred_check_branch
      %182 = sbr.rel (0) target = $region29
    $region28: #{_run_kernel.1} parent=1 // pred_region
      %183 = dma.done [#allocation4], 256
    $region29: #{_run_kernel.1} parent=1 // pred_fallthru
      _
    %184 = vsyncpa [#allocation3], 1
    %185 = vsyncpa [#allocation4], 1

</llo_original>
